<compile_context>
chip_gen: v5e
topology: v5e:2x2
jax: 0.10.0
libtpu: 0.0.40
codegen_flags: <defaults>
</compile_context>

<pallas_src>
import functools

import jax
import jax.numpy as jnp
from jax.experimental import pallas as pl
from jax.experimental.pallas import tpu as pltpu


LANE = 128
DEFAULT_BATCH_TILE = 256      # tune: ~128 on v5e, 256 on v6e/v7x
_RESIDENT_WEIGHT_BUDGET = 24 * 1024 * 1024   # bytes; conservative for v7x VMEM
_VMEM_LIMIT_CAP = 56 * 1024 * 1024


def _round_up(n, m):
    return ((n + m - 1) // m) * m


def _pad_to(a, shape):
    pads = [(0, s - d) for d, s in zip(a.shape, shape)]
    return jnp.pad(a, pads)


# ----------------------------------------------------------------------------
# Fused Pallas kernel: all EISANI hidden layers + output-layer accumulation
# ----------------------------------------------------------------------------
def _eisani_fused_kernel(init_ref, w0_ref, wr_ref, o_ref, out_ref, act_ref, *,
                         thresh, resident, num_layers, act_dtype):
    # init_ref : (TB, P0_pad)            bf16 {0,1}  thermometer-encoded input tile
    # w0_ref   : (P0_pad, H_pad)         bf16        layer-0 connection matrix
    # wr_ref   : resident: (L-1, H_pad, H_pad) bf16  layers 1..L-1 connection stack
    #            streamed: (H_pad, H_pad)            current layer's block
    # o_ref    : resident: (L, H_pad, C_pad)   bf16  output-connection stack
    #            streamed: (H_pad, C_pad)            current layer's block
    # out_ref  : (TB, C_pad)             f32         class accumulator (VMEM-resident
    #                                                across the "arbitrary" layer axis)
    # act_ref  : (TB, H_pad)             bf16        previous-layer binary activation
    layer = pl.program_id(1)

    def _layer_step(prev, w, o):
        z = jnp.dot(prev, w, preferred_element_type=jnp.float32)   # MXU
        act = (z >= thresh).astype(act_dtype)                      # VPU threshold
        act_ref[...] = act                                         # carry to next layer
        out_ref[...] += jnp.dot(act, o,
                                preferred_element_type=jnp.float32)  # MXU

    @pl.when(layer == 0)
    def _first_layer():
        out_ref[...] = jnp.zeros_like(out_ref)
        o0 = o_ref[0] if resident else o_ref[...]
        _layer_step(init_ref[...], w0_ref[...], o0)

    if num_layers > 1:
        @pl.when(layer > 0)
        def _later_layers():
            if resident:
                w = wr_ref[layer - 1]
                o = o_ref[layer]
            else:
                w = wr_ref[...]
                o = o_ref[...]
            _layer_step(act_ref[...], w, o)


def _eisani_fused_call(init_act, w0, wr_stack, o_stack, thresh, *, batch_tile,
                       act_dtype=jnp.bfloat16):
    # init_act : (B_pad, P0_pad)          bf16
    # w0       : (P0_pad, H_pad)          bf16
    # wr_stack : (max(L-1,1), H_pad, H_pad) bf16
    # o_stack  : (L, H_pad, C_pad)        bf16
    b_pad, p0_pad = init_act.shape
    h_pad = w0.shape[1]
    num_layers, _, c_pad = o_stack.shape
    tb = batch_tile
    assert b_pad % tb == 0
    # Padded hidden/class columns stay zero because padded weight rows/cols are
    # zero; thresh > 0 additionally keeps padded neurons inactive.
    assert thresh > 0, "segmentActivationThreshold must be > 0"

    itemsize = jnp.dtype(act_dtype).itemsize
    weight_bytes = (w0.size + wr_stack.size + o_stack.size) * itemsize
    io_bytes = (2 * tb * p0_pad * itemsize        # init tile (double-buffered)
                + 2 * tb * c_pad * 4              # out tile  (double-buffered, f32)
                + tb * h_pad * itemsize)          # activation scratch
    resident = (weight_bytes + io_bytes) <= _RESIDENT_WEIGHT_BUDGET

    if resident:
        # Constant index maps -> each weight array is DMA'd into VMEM once and
        # stays resident for the whole grid (no per-batch-tile re-fetch).
        w0_spec = pl.BlockSpec(w0.shape, lambda b, l: (0, 0))
        wr_spec = pl.BlockSpec(wr_stack.shape, lambda b, l: (0, 0, 0))
        o_spec = pl.BlockSpec(o_stack.shape, lambda b, l: (0, 0, 0))
        est_vmem = weight_bytes + io_bytes
    else:
        # Stream one layer's blocks per grid step.
        # TODO(synk): for very large H (weight block > VMEM on v7x) add a grid
        # axis tiling the hidden (N/K) dim, and/or pl.Buffered(3) on v5e/v6e.
        w0_spec = pl.BlockSpec(w0.shape, lambda b, l: (0, 0))
        wr_spec = pl.BlockSpec((None, h_pad, h_pad),
                               lambda b, l: (jnp.maximum(l - 1, 0), 0, 0))
        o_spec = pl.BlockSpec((None, h_pad, c_pad), lambda b, l: (l, 0, 0))
        est_vmem = (w0.size * itemsize
                    + 2 * h_pad * h_pad * itemsize
                    + 2 * h_pad * c_pad * itemsize
                    + io_bytes)

    vmem_limit = int(min(max(2 * est_vmem + 2 * 1024 * 1024, 4 * 1024 * 1024),
                         _VMEM_LIMIT_CAP))

    kernel = functools.partial(_eisani_fused_kernel,
                               thresh=float(thresh),
                               resident=resident,
                               num_layers=num_layers,
                               act_dtype=act_dtype)

    return pl.pallas_call(
        kernel,
        out_shape=jax.ShapeDtypeStruct((b_pad, c_pad), jnp.float32),
        grid_spec=pltpu.PrefetchScalarGridSpec(
            num_scalar_prefetch=0,
            grid=(b_pad // tb, num_layers),
            in_specs=[
                pl.BlockSpec((tb, p0_pad), lambda b, l: (b, 0)),
                w0_spec,
                wr_spec,
                o_spec,
            ],
            out_specs=pl.BlockSpec((tb, c_pad), lambda b, l: (b, 0)),
            scratch_shapes=[pltpu.VMEM((tb, h_pad), act_dtype)],
        ),
        compiler_params=pltpu.CompilerParams(
            dimension_semantics=("parallel", "arbitrary"),
            vmem_limit_bytes=vmem_limit),
    )(init_act, w0, wr_stack, o_stack)


# ----------------------------------------------------------------------------
# Glue: continuous-variable (thermometer) encoding — cheap elementwise, bf16
# ----------------------------------------------------------------------------
def thermometer_encode(x, num_bits):
    # x: (B, F) in [0, 1] -> (B, F * num_bits) binary bf16.
    # TODO(synk): verify threshold placement bit-for-bit against the PyTorch
    # EISANIpt_EISANImodelContinuousVarEncoding.continuousVarEncoding helper.
    # TODO(synk): for large F*num_bits, fold the encode into the kernel's
    # layer==0 branch to avoid materializing the encoded activation in HBM.
    thr = (jnp.arange(num_bits, dtype=jnp.float32) + 0.5) / num_bits
    enc = (x[:, :, None] >= thr[None, None, :]).astype(jnp.bfloat16)   # (B, F, NB)
    return enc.reshape(x.shape[0], -1)


# ----------------------------------------------------------------------------
# Parameter initialization (deterministic, mirrors _initialise_layer_weights)
# ----------------------------------------------------------------------------
def init_hidden_weight(key, num_neurons, prev_size, k):
    # Dense, non-EI, non-dynamic: each neuron gets exactly k random synapses
    # with random signs +/-1. PyTorch layout (num_neurons, prev_size).
    kperm, ksign = jax.random.split(key)
    scores = jax.random.uniform(kperm, (num_neurons, prev_size))
    syn_idx = jnp.argsort(scores, axis=1)[:, :k]                       # (H, k)
    signs = jnp.where(jax.random.bernoulli(ksign, 0.5, (num_neurons, k)),
                      1.0, -1.0).astype(jnp.float32)
    w = jnp.zeros((num_neurons, prev_size), jnp.float32)
    w = w.at[jnp.arange(num_neurons)[:, None], syn_idx].set(signs)
    return w                                                           # (H, P)


def init_output_conn(key, hidden, classes):
    # PyTorch __init__ uses zeros (connections are learned during training).
    # For a non-trivial synthetic eval forward we use deterministic random
    # binary connections instead (values {0,1}, exact in bf16).
    return jax.random.bernoulli(key, 0.3, (hidden, classes)).astype(jnp.float32)


# ----------------------------------------------------------------------------
# One-time parameter preparation (pad, transpose, cast, stack) — outside jit
# ----------------------------------------------------------------------------
def prepare_eisani_params(hidden_weights, output_conns, dtype=jnp.bfloat16):
    # hidden_weights[i]: (H, prevSize) values in {-1,0,+1} (PyTorch layout)
    # output_conns[i]  : (H, C)
    num_layers = len(hidden_weights)
    H, P0 = hidden_weights[0].shape
    C = output_conns[0].shape[1]
    p0_pad = _round_up(P0, LANE)
    h_pad = _round_up(H, LANE)
    c_pad = _round_up(C, LANE)

    w0 = _pad_to(jnp.asarray(hidden_weights[0]).T.astype(dtype), (p0_pad, h_pad))
    if num_layers > 1:
        wr = jnp.stack([_pad_to(jnp.asarray(w).T.astype(dtype), (h_pad, h_pad))
                        for w in hidden_weights[1:]])
    else:
        wr = jnp.zeros((1, h_pad, h_pad), dtype)        # dummy, never read
    o = jnp.stack([_pad_to(jnp.asarray(oc).astype(dtype), (h_pad, c_pad))
                   for oc in output_conns])
    return w0, wr, o


# ----------------------------------------------------------------------------
# Full EISANI forward (eval path): returns (loss, accuracy, preds, outputActs)
# ----------------------------------------------------------------------------
@functools.partial(jax.jit,
                   static_argnames=("num_bits", "thresh", "num_classes",
                                    "batch_tile"))
def eisani_forward(x, y, w0, wr, o, *, num_bits, thresh, num_classes,
                   batch_tile=DEFAULT_BATCH_TILE):
    B = x.shape[0]
    p0_pad = w0.shape[0]

    enc = thermometer_encode(x, num_bits)                      # (B, P0) bf16 {0,1}

    # Batch tile: large enough to fill the MXU M dim at realistic batch sizes,
    # clamped down for tiny batches (bf16 min sublane tile is 16).
    tb = max(16, min(batch_tile, _round_up(B, 16)))
    b_pad = _round_up(B, tb)
    init_p = _pad_to(enc, (b_pad, p0_pad))

    out_padded = _eisani_fused_call(init_p, w0, wr, o, thresh, batch_tile=tb)

    # f32 accumulation of integer class counts is exact up to 2^24 — fine here.
    out_acc = out_padded[:B, :num_classes]
    predictions = jnp.argmax(out_acc, axis=1)                  # (B,)
    accuracy = jnp.mean((predictions == y).astype(jnp.float32))
    loss = 0.0                                                 # Loss(0.0) in PyTorch
    return loss, accuracy, predictions, out_acc
    # TODO(synk): training-side ops (dynamic hidden-connection generation /
    # sparse COO growth, output-connection learning updates, hiddenNeuronUsage
    # statistics, post-train pruning) are stateful with data-dependent shapes
    # and have no clean pure/static-shape Pallas equivalent; eval path only.
    # TODO(synk): exploit the k-sparse synapse structure (gather formulation)
    # instead of dense {-1,0,+1} matmuls when prevSize is very large.


# Pure-JAX reference (same math, f32) used to sanity-check the kernel output.
def eisani_forward_ref(x, hidden_weights, output_conns, num_bits, thresh):
    act = thermometer_encode(x, num_bits).astype(jnp.float32)
    out = jnp.zeros((x.shape[0], output_conns[0].shape[1]), jnp.float32)
    for w, oc in zip(hidden_weights, output_conns):
        z = act @ jnp.asarray(w, jnp.float32).T
        act = (z >= thresh).astype(jnp.float32)
        out = out + act @ jnp.asarray(oc, jnp.float32)
    return out


if __name__ == "__main__":
    # Config (EISANIconfig equivalents)
    batchSize = 2
    numberOfFeatures = 4
    EISANITABcontinuousVarEncodingNumBits = 8
    encodedFeatureSize = numberOfFeatures * EISANITABcontinuousVarEncodingNumBits  # 32
    hiddenLayerSize = 32
    numberOfClasses = 4
    numberOfLayers = 3
    numberOfHiddenLayers = numberOfLayers - 1          # useTabularDataset
    numberUniqueHiddenLayers = numberOfHiddenLayers    # recursiveLayers=False
    numberOfSynapsesPerSegment = 5
    segmentActivationThreshold = numberOfSynapsesPerSegment // 2  # = 2

    key = jax.random.PRNGKey(0)
    kx, ky, key = jax.random.split(key, 3)
    x = jax.random.uniform(kx, (batchSize, numberOfFeatures), jnp.float32)
    y = jax.random.randint(ky, (batchSize,), 0, numberOfClasses)

    # Build hidden connection matrices and output connection matrices
    hidden_weights = []
    output_conns = []
    prev_size = encodedFeatureSize
    for _ in range(numberUniqueHiddenLayers):
        kw, ko, key = jax.random.split(key, 3)
        hidden_weights.append(
            init_hidden_weight(kw, hiddenLayerSize, prev_size,
                               numberOfSynapsesPerSegment))
        output_conns.append(init_output_conn(ko, hiddenLayerSize, numberOfClasses))
        prev_size = hiddenLayerSize

    # One-time pad/cast/stack of the static parameters (outside the jitted fwd).
    w0, wr, o = prepare_eisani_params(hidden_weights, output_conns)

    loss, accuracy, preds, out_acts = eisani_forward(
        x, y, w0, wr, o,
        num_bits=EISANITABcontinuousVarEncodingNumBits,
        thresh=segmentActivationThreshold,
        num_classes=numberOfClasses)

    jax.block_until_ready(out_acts)
    jax.block_until_ready(accuracy)

    # Correctness check against the pure-JAX reference (exact small integers).
    ref = eisani_forward_ref(x, hidden_weights, output_conns,
                             EISANITABcontinuousVarEncodingNumBits,
                             segmentActivationThreshold)
    assert bool(jnp.allclose(out_acts, ref, atol=1e-3)), "kernel != reference"

    print("KERNEL_OK")
</pallas_src>

<mosaic_0001>
module attributes {stable_mosaic.version = 11 : i64} {
  func.func @_eisani_fused_kernel(%arg0: i32, %arg1: i32, %arg2: memref<16x128xbf16, #tpu.memory_space<vmem>>, %arg3: memref<128x128xbf16, #tpu.memory_space<vmem>>, %arg4: memref<1x128x128xbf16, #tpu.memory_space<vmem>>, %arg5: memref<2x128x128xbf16, #tpu.memory_space<vmem>>, %arg6: memref<16x128xf32, #tpu.memory_space<vmem>>, %arg7: memref<16x128xbf16, #tpu.memory_space<vmem>>) attributes {dimension_semantics = [#tpu.dimension_semantics<parallel>, #tpu.dimension_semantics<arbitrary>], iteration_bounds = array<i64: 1, 2>, scalar_prefetch = 0 : i64, scratch_operands = 1 : i64, tpu.core_type = #tpu.core_type<tc>, window_params = [{transform_indices = @transform_0, window_bounds = array<i64: 16, 128>}, {pipeline_mode = #tpu.pipeline_mode<synchronous>, transform_indices = @transform_1, window_bounds = array<i64: 128, 128>}, {pipeline_mode = #tpu.pipeline_mode<synchronous>, transform_indices = @transform_2, window_bounds = array<i64: 1, 128, 128>}, {pipeline_mode = #tpu.pipeline_mode<synchronous>, transform_indices = @transform_3, window_bounds = array<i64: 2, 128, 128>}, {transform_indices = @transform_4, window_bounds = array<i64: 16, 128>}]} {
    %c0_i32 = arith.constant 0 : i32
    %0 = arith.cmpi eq, %arg1, %c0_i32 : i32
    %1 = arith.extui %0 : i1 to i32
    %c0_i32_0 = arith.constant 0 : i32
    %2 = arith.cmpi ne, %1, %c0_i32_0 : i32
    scf.if %2 {
      %cst = arith.constant 0.000000e+00 : f32
      %6 = vector.broadcast %cst : f32 to vector<16x128xf32>
      %c0 = arith.constant 0 : index
      %c0_3 = arith.constant 0 : index
      %7 = vector.load %arg6[%c0, %c0_3] : memref<16x128xf32, #tpu.memory_space<vmem>>, vector<16x128xf32>
      tpu.vector_store %arg6[%c0, %c0_3], %6 {strides = array<i32>} : memref<16x128xf32, #tpu.memory_space<vmem>>, vector<16x128xf32>,
      %c0_4 = arith.constant 0 : index
      %c0_5 = arith.constant 0 : index
      %c0_6 = arith.constant 0 : index
      %8 = vector.load %arg5[%c0_4, %c0_5, %c0_6] : memref<2x128x128xbf16, #tpu.memory_space<vmem>>, vector<1x128x128xbf16>
      %9 = vector.shape_cast %8 : vector<1x128x128xbf16> to vector<128x128xbf16>
      %c0_7 = arith.constant 0 : index
      %c0_8 = arith.constant 0 : index
      %10 = vector.load %arg2[%c0_7, %c0_8] : memref<16x128xbf16, #tpu.memory_space<vmem>>, vector<16x128xbf16>
      %c0_9 = arith.constant 0 : index
      %c0_10 = arith.constant 0 : index
      %11 = vector.load %arg3[%c0_9, %c0_10] : memref<128x128xbf16, #tpu.memory_space<vmem>>, vector<128x128xbf16>
      %cst_11 = arith.constant dense<0.000000e+00> : vector<16x128xf32>
      %12 = tpu.matmul %10, %11, %cst_11 {dimension_numbers = #tpu.dot_dimension_numbers<[1], [0], [0], [1], [0, 0, 1, 1], [], []>} : vector<16x128xbf16>, vector<128x128xbf16>, vector<16x128xf32> -> vector<16x128xf32>
      %cst_12 = arith.constant 2.000000e+00 : f32
      %13 = vector.broadcast %cst_12 : f32 to vector<16x128xf32>
      %14 = arith.cmpf oge, %12, %13 : vector<16x128xf32>
      %15 = arith.extui %14 : vector<16x128xi1> to vector<16x128xi32>
      %16 = arith.sitofp %15 : vector<16x128xi32> to vector<16x128xf32>
      %17 = arith.truncf %16 : vector<16x128xf32> to vector<16x128xbf16>
      %c0_13 = arith.constant 0 : index
      %c0_14 = arith.constant 0 : index
      %18 = vector.load %arg7[%c0_13, %c0_14] : memref<16x128xbf16, #tpu.memory_space<vmem>>, vector<16x128xbf16>
      tpu.vector_store %arg7[%c0_13, %c0_14], %17 {strides = array<i32>} : memref<16x128xbf16, #tpu.memory_space<vmem>>, vector<16x128xbf16>,
      %c0_15 = arith.constant 0 : index
      %c0_16 = arith.constant 0 : index
      %19 = vector.load %arg6[%c0_15, %c0_16] : memref<16x128xf32, #tpu.memory_space<vmem>>, vector<16x128xf32>
      %cst_17 = arith.constant dense<0.000000e+00> : vector<16x128xf32>
      %20 = tpu.matmul %17, %9, %cst_17 {dimension_numbers = #tpu.dot_dimension_numbers<[1], [0], [0], [1], [0, 0, 1, 1], [], []>} : vector<16x128xbf16>, vector<128x128xbf16>, vector<16x128xf32> -> vector<16x128xf32>
      %21 = arith.addf %19, %20 : vector<16x128xf32>
      %c0_18 = arith.constant 0 : index
      %c0_19 = arith.constant 0 : index
      %22 = vector.load %arg6[%c0_18, %c0_19] : memref<16x128xf32, #tpu.memory_space<vmem>>, vector<16x128xf32>
      tpu.vector_store %arg6[%c0_18, %c0_19], %21 {strides = array<i32>} : memref<16x128xf32, #tpu.memory_space<vmem>>, vector<16x128xf32>,
    } else {
    }
    %c0_i32_1 = arith.constant 0 : i32
    %3 = arith.cmpi sgt, %arg1, %c0_i32_1 : i32
    %4 = arith.extui %3 : i1 to i32
    %c0_i32_2 = arith.constant 0 : i32
    %5 = arith.cmpi ne, %4, %c0_i32_2 : i32
    scf.if %5 {
      %c1_i32 = arith.constant 1 : i32
      %6 = arith.subi %arg1, %c1_i32 : i32
      %7 = arith.index_cast %6 : i32 to index
      %c0 = arith.constant 0 : index
      %c0_3 = arith.constant 0 : index
      %8 = vector.load %arg4[%7, %c0, %c0_3] : memref<1x128x128xbf16, #tpu.memory_space<vmem>>, vector<1x128x128xbf16>
      %9 = vector.shape_cast %8 : vector<1x128x128xbf16> to vector<128x128xbf16>
      %10 = arith.index_cast %arg1 : i32 to index
      %c0_4 = arith.constant 0 : index
      %c0_5 = arith.constant 0 : index
      %11 = vector.load %arg5[%10, %c0_4, %c0_5] : memref<2x128x128xbf16, #tpu.memory_space<vmem>>, vector<1x128x128xbf16>
      %12 = vector.shape_cast %11 : vector<1x128x128xbf16> to vector<128x128xbf16>
      %c0_6 = arith.constant 0 : index
      %c0_7 = arith.constant 0 : index
      %13 = vector.load %arg7[%c0_6, %c0_7] : memref<16x128xbf16, #tpu.memory_space<vmem>>, vector<16x128xbf16>
      %cst = arith.constant dense<0.000000e+00> : vector<16x128xf32>
      %14 = tpu.matmul %13, %9, %cst {dimension_numbers = #tpu.dot_dimension_numbers<[1], [0], [0], [1], [0, 0, 1, 1], [], []>} : vector<16x128xbf16>, vector<128x128xbf16>, vector<16x128xf32> -> vector<16x128xf32>
      %cst_8 = arith.constant 2.000000e+00 : f32
      %15 = vector.broadcast %cst_8 : f32 to vector<16x128xf32>
      %16 = arith.cmpf oge, %14, %15 : vector<16x128xf32>
      %17 = arith.extui %16 : vector<16x128xi1> to vector<16x128xi32>
      %18 = arith.sitofp %17 : vector<16x128xi32> to vector<16x128xf32>
      %19 = arith.truncf %18 : vector<16x128xf32> to vector<16x128xbf16>
      %c0_9 = arith.constant 0 : index
      %c0_10 = arith.constant 0 : index
      %20 = vector.load %arg7[%c0_9, %c0_10] : memref<16x128xbf16, #tpu.memory_space<vmem>>, vector<16x128xbf16>
      tpu.vector_store %arg7[%c0_9, %c0_10], %19 {strides = array<i32>} : memref<16x128xbf16, #tpu.memory_space<vmem>>, vector<16x128xbf16>,
      %c0_11 = arith.constant 0 : index
      %c0_12 = arith.constant 0 : index
      %21 = vector.load %arg6[%c0_11, %c0_12] : memref<16x128xf32, #tpu.memory_space<vmem>>, vector<16x128xf32>
      %cst_13 = arith.constant dense<0.000000e+00> : vector<16x128xf32>
      %22 = tpu.matmul %19, %12, %cst_13 {dimension_numbers = #tpu.dot_dimension_numbers<[1], [0], [0], [1], [0, 0, 1, 1], [], []>} : vector<16x128xbf16>, vector<128x128xbf16>, vector<16x128xf32> -> vector<16x128xf32>
      %23 = arith.addf %21, %22 : vector<16x128xf32>
      %c0_14 = arith.constant 0 : index
      %c0_15 = arith.constant 0 : index
      %24 = vector.load %arg6[%c0_14, %c0_15] : memref<16x128xf32, #tpu.memory_space<vmem>>, vector<16x128xf32>
      tpu.vector_store %arg6[%c0_14, %c0_15], %23 {strides = array<i32>} : memref<16x128xf32, #tpu.memory_space<vmem>>, vector<16x128xf32>,
    } else {
    }
    return
  }
  func.func @transform_0(%arg0: i32, %arg1: i32) -> (i32, i32) {
    %c0_i32 = arith.constant 0 : i32
    %c0_i32_0 = arith.constant 0 : i32
    return %arg0, %c0_i32 : i32, i32
  }
  func.func @transform_1(%arg0: i32, %arg1: i32) -> (i32, i32) {
    %c0_i32 = arith.constant 0 : i32
    %c0_i32_0 = arith.constant 0 : i32
    %c0_i32_1 = arith.constant 0 : i32
    return %c0_i32, %c0_i32_0 : i32, i32
  }
  func.func @transform_2(%arg0: i32, %arg1: i32) -> (i32, i32, i32) {
    %c0_i32 = arith.constant 0 : i32
    %c0_i32_0 = arith.constant 0 : i32
    %c0_i32_1 = arith.constant 0 : i32
    %c0_i32_2 = arith.constant 0 : i32
    return %c0_i32, %c0_i32_0, %c0_i32_1 : i32, i32, i32
  }
  func.func @transform_3(%arg0: i32, %arg1: i32) -> (i32, i32, i32) {
    %c0_i32 = arith.constant 0 : i32
    %c0_i32_0 = arith.constant 0 : i32
    %c0_i32_1 = arith.constant 0 : i32
    %c0_i32_2 = arith.constant 0 : i32
    return %c0_i32, %c0_i32_0, %c0_i32_1 : i32, i32, i32
  }
  func.func @transform_4(%arg0: i32, %arg1: i32) -> (i32, i32) {
    %c0_i32 = arith.constant 0 : i32
    %c0_i32_0 = arith.constant 0 : i32
    return %arg0, %c0_i32 : i32, i32
  }
}

</mosaic_0001>

<llo_original>
// kernel: eisani_forward.1
$region0: #{eisani_forward.1}
  #allocation0 [shape = 'u32[]', space=smem, size = 0x4, offset = 0x4, fixed_abs, tag = 'smem constant byte address 0x4 - core index']
  #allocation1 [shape = 'u32[72,128]{1,0:T(1,128)}', space=vmem, size = 0x9000, scoped, tag = 'internal scratch']
  #allocation2 [shape = 'bf16[16,128]{1,0:T(8,128)(2,1)}', space=vmem, size = 0x1000, scoped, tag = 'scratch operand']
  %s0 = inlined_call_operand.vmem [shape: bf16[16,128], index: 0, kind: input, shape index: {}]
  %s1 = inlined_call_operand.hbm [shape: bf16[128,128], index: 1, kind: input, shape index: {}]
  %s2 = inlined_call_operand.hbm [shape: bf16[1,128,128], index: 2, kind: input, shape index: {}]
  %s3 = inlined_call_operand.hbm [shape: bf16[2,128,128], index: 3, kind: input, shape index: {}]
  %s4 = inlined_call_operand.vmem [shape: f32[16,128], index: 4, kind: output, shape index: {}]
  %s5 = sld [smem:[#allocation0]]
  $region69: #{eisani_forward.1} parent=0
    _
  %s7 = ssub.s32 1, %s5
  %s8 = scalar_select 0, %s7, %s5
  $region1: #{eisani_forward.1} parent=0
    #allocation3 [shape = 'u8[32768]{0}', space=vmem, size = 0x8000, scoped, tag = 'input window, operand 1, single buffered']
    #allocation4 [shape = 's32[2]{0}', space=sflag, size = 0x8, scoped, tag = 'scoped memory for eisani_forward.1']
    #allocation5 [shape = 'u8[32768]{0}', space=vmem, size = 0x8000, scoped, tag = 'input window, operand 2, single buffered']
    #allocation6 [shape = 's32[1]{0}', space=sflag, size = 0x4, scoped, tag = 'scoped memory for eisani_forward.1']
    #allocation7 [shape = 'u8[65536]{0}', space=vmem, size = 0x10000, scoped, tag = 'input window, operand 3, single buffered']
    %9 = vsyncpa [#allocation4], 0
    %10 = vsyncpa [#allocation6], 0
    loop: start=0, step=1, limit=4
    $region2: #{eisani_forward.1} parent=1 // loop_pre_header
      _
    $region3: #{eisani_forward.1} parent=1 // loop_header
      %s12 = sphi 0, %s16
      %p13 = scmp.ge.s32.totalorder %s12, 4
      %s19 = sphi 0, %s31
      %s20 = sphi 0, %s27
      %s21 = sphi 0, %s19
      %s22 = sphi 0, %s20
      %s23 = sphi 0, %s21
      %s24 = sphi 0, %s22
      %s34 = sphi 0, %s36
      %s37 = sphi 0, %s34
      %s38 = sphi 0, %s37
      %s54 = sphi 0, %s38
      %s58 = sphi 0, %s58
      %s60 = sphi 0, %s58
      %s61 = sphi 0, %s60
      %s75 = sphi 0, %s61
      %s79 = sphi 0, %s79
      %s81 = sphi 0, %s79
      %s82 = sphi 0, %s81
      %s96 = sphi 0, %s82
      %s100 = sphi 0, %s100
      %s102 = sphi 0, %s100
      %s103 = sphi 0, %s102
      %s117 = sphi 0, %s103
      %s123 = sphi 0, %s125
      %s126 = sphi 0, %s123
      %s127 = sphi 0, %s126
      %s143 = sphi 0, %s127
    $region4: #{eisani_forward.1} parent=1 // loop_header_branch
      %15 = sbr.rel (%p13) target = $region8
    $region5: #{eisani_forward.1} parent=1 // loop_body
      %s17 = ssub.s32 %s12, 1
      %s18 = ssub.s32 %s12, 2
      %s25 = sadd.s32 1, %s20
      %p26 = scmp.ge.s32.totalorder %s25, 2
      %s27 = scalar_select %p26, 0, %s25
      %s28 = sadd.s32 1, %s19
      %s29 = scalar_select %p26, %s28, %s19
      %p30 = scmp.ge.s32.totalorder %s29, 1
      %s31 = scalar_select %p30, 0, %s29
      %s32 = ssub.s32 %s19, %s31
      %p33 = scmp.eq.s32.totalorder %s32, 0
      %s35 = sadd.s32 %s34, 1
      %s36 = scalar_select %p33, %s34, %s35
      %p39 = pneg %p33
      %p40 = scmp.eq.s32.totalorder %s12, 1
      %p41 = por %p39, %p40
      %p42 = scmp.ne.s32.totalorder %s34, %s37
      %p43 = scmp.eq.s32.totalorder %s12, 0
      %p44 = por %p42, %p43
      %p45 = scmp.ne.s32.totalorder %s34, %s37
      %p46 = scmp.eq.s32.totalorder %s17, 1
      %p47 = por %p45, %p46
      %p48 = scmp.ne.s32.totalorder %s37, %s38
      %p49 = scmp.eq.s32.totalorder %s17, 0
      %p50 = por %p48, %p49
      %p51 = scmp.ne.s32.totalorder %s37, %s38
      %p52 = scmp.eq.s32.totalorder %s18, 1
      %p53 = por %p51, %p52
      %p55 = scmp.ne.s32.totalorder %s38, %s54
      %p56 = scmp.eq.s32.totalorder %s18, 0
      %p57 = por %p55, %p56
      %s59 = sadd.s32 %s58, 1
      %p62 = scmp.eq.s32.totalorder %s12, 1
      %p63 = scmp.ne.s32.totalorder %s58, %s60
      %p64 = scmp.eq.s32.totalorder %s12, 0
      %p65 = por %p63, %p64
      %p66 = scmp.ne.s32.totalorder %s58, %s60
      %p67 = scmp.eq.s32.totalorder %s17, 1
      %p68 = por %p66, %p67
      %p69 = scmp.ne.s32.totalorder %s60, %s61
      %p70 = scmp.eq.s32.totalorder %s17, 0
      %p71 = por %p69, %p70
      %p72 = scmp.ne.s32.totalorder %s60, %s61
      %p73 = scmp.eq.s32.totalorder %s18, 1
      %p74 = por %p72, %p73
      %p76 = scmp.ne.s32.totalorder %s61, %s75
      %p77 = scmp.eq.s32.totalorder %s18, 0
      %p78 = por %p76, %p77
      %s80 = sadd.s32 %s79, 1
      %p83 = scmp.eq.s32.totalorder %s12, 1
      %p84 = scmp.ne.s32.totalorder %s79, %s81
      %p85 = scmp.eq.s32.totalorder %s12, 0
      %p86 = por %p84, %p85
      %p87 = scmp.ne.s32.totalorder %s79, %s81
      %p88 = scmp.eq.s32.totalorder %s17, 1
      %p89 = por %p87, %p88
      %p90 = scmp.ne.s32.totalorder %s81, %s82
      %p91 = scmp.eq.s32.totalorder %s17, 0
      %p92 = por %p90, %p91
      %p93 = scmp.ne.s32.totalorder %s81, %s82
      %p94 = scmp.eq.s32.totalorder %s18, 1
      %p95 = por %p93, %p94
      %p97 = scmp.ne.s32.totalorder %s82, %s96
      %p98 = scmp.eq.s32.totalorder %s18, 0
      %p99 = por %p97, %p98
      %s101 = sadd.s32 %s100, 1
      %p104 = scmp.eq.s32.totalorder %s12, 1
      %p105 = scmp.ne.s32.totalorder %s100, %s102
      %p106 = scmp.eq.s32.totalorder %s12, 0
      %p107 = por %p105, %p106
      %p108 = scmp.ne.s32.totalorder %s100, %s102
      %p109 = scmp.eq.s32.totalorder %s17, 1
      %p110 = por %p108, %p109
      %p111 = scmp.ne.s32.totalorder %s102, %s103
      %p112 = scmp.eq.s32.totalorder %s17, 0
      %p113 = por %p111, %p112
      %p114 = scmp.ne.s32.totalorder %s102, %s103
      %p115 = scmp.eq.s32.totalorder %s18, 1
      %p116 = por %p114, %p115
      %p118 = scmp.ne.s32.totalorder %s103, %s117
      %p119 = scmp.eq.s32.totalorder %s18, 0
      %p120 = por %p118, %p119
      %s121 = ssub.s32 %s19, %s31
      %p122 = scmp.eq.s32.totalorder %s121, 0
      %s124 = sadd.s32 %s123, 1
      %s125 = scalar_select %p122, %s123, %s124
      %p128 = pneg %p122
      %p129 = scmp.eq.s32.totalorder %s12, 1
      %p130 = por %p128, %p129
      %p131 = scmp.ne.s32.totalorder %s123, %s126
      %p132 = scmp.eq.s32.totalorder %s12, 0
      %p133 = por %p131, %p132
      %p134 = scmp.ne.s32.totalorder %s123, %s126
      %p135 = scmp.eq.s32.totalorder %s17, 1
      %p136 = por %p134, %p135
      %p137 = scmp.ne.s32.totalorder %s126, %s127
      %p138 = scmp.eq.s32.totalorder %s17, 0
      %p139 = por %p137, %p138
      %p140 = scmp.ne.s32.totalorder %s126, %s127
      %p141 = scmp.eq.s32.totalorder %s18, 1
      %p142 = por %p140, %p141
      %p144 = scmp.ne.s32.totalorder %s127, %s143
      %p145 = scmp.eq.s32.totalorder %s18, 0
      %p146 = por %p144, %p145
      %p147 = scmp.le.s32.totalorder 1, %s12
      %p148 = scmp.lt.s32.totalorder %s12, 3
      %p149 = pnand %p147, %p148
      %p150 = pneg %p149
      // Predicated region
      $region9: #{eisani_forward.1} parent=5 // pred_check
        _
      $region10: #{eisani_forward.1} parent=5 // pred_check_branch
        %152 = sbr.rel (%p149) target = $region12
      $region11: #{eisani_forward.1} parent=5 // pred_region
        %s153 = ssub.s32 %s12, 1
        // Predicated region
        $region13: #{eisani_forward.1} parent=11 // pred_check
          %p154 = pneg %p50
        $region14: #{eisani_forward.1} parent=11 // pred_check_branch
          %156 = sbr.rel (%p154) target = $region16
        $region15: #{eisani_forward.1} parent=11 // pred_region
          %s157 = smul.u32 2, %s21
          %p158 = scmp.lt.s32.totalorder %s157, 1
          %s159 = scalar_select %p158, %s157, 1
          %s160 = smul.addr %s159, 4
          %s161 = scalar_lea.vmem %s0, %s160
          %s162 = smul.u32 2, %s21
        $region16: #{eisani_forward.1} parent=11 // pred_fallthru
          _
        // Predicated region
        $region17: #{eisani_forward.1} parent=11 // pred_check
          %p163 = pneg %p71
        $region18: #{eisani_forward.1} parent=11 // pred_check_branch
          %165 = sbr.rel (%p163) target = $region20
        $region19: #{eisani_forward.1} parent=11 // pred_region
          %167 = vsyncadd [#allocation4], 0
          %s168 = sshll.u32 %s1, 4
          %s169 = int_to_ptr.hbm [resolvable:$true] %s168
          %s170 = sshll.u32 [#allocation3], 4
          %s171 = int_to_ptr.vmem [resolvable:$true] %s170
          %176 = dma.hbm_to_vmem [thread:$0]  %s169, 1024, %s171, [#allocation4], 64, 64, 4
        $region20: #{eisani_forward.1} parent=11 // pred_fallthru
          _
        // Predicated region
        $region21: #{eisani_forward.1} parent=11 // pred_check
          %p177 = pneg %p92
        $region22: #{eisani_forward.1} parent=11 // pred_check_branch
          %179 = sbr.rel (%p177) target = $region24
        $region23: #{eisani_forward.1} parent=11 // pred_region
          %181 = vsyncadd [#allocation6], 0
          %s182 = sshll.u32 %s2, 4
          %s183 = int_to_ptr.hbm [resolvable:$true] %s182
          %s184 = sshll.u32 [#allocation5], 4
          %s185 = int_to_ptr.vmem [resolvable:$true] %s184
          %190 = dma.hbm_to_vmem [thread:$0]  %s183, 1024, %s185, [#allocation6], 64, 64, 4
        $region24: #{eisani_forward.1} parent=11 // pred_fallthru
          _
        // Predicated region
        $region25: #{eisani_forward.1} parent=11 // pred_check
          %p191 = pneg %p113
        $region26: #{eisani_forward.1} parent=11 // pred_check_branch
          %193 = sbr.rel (%p191) target = $region28
        $region27: #{eisani_forward.1} parent=11 // pred_region
          %195 = vsyncadd [#allocation6], 0
          %s196 = sshll.u32 %s3, 4
          %s197 = int_to_ptr.hbm [resolvable:$true] %s196
          %s198 = sshll.u32 [#allocation7], 4
          %s199 = int_to_ptr.vmem [resolvable:$true] %s198
          %204 = dma.hbm_to_vmem [thread:$0]  %s197, 2048, %s199, [#allocation6], 64, 64, 4
        $region28: #{eisani_forward.1} parent=11 // pred_fallthru
          _
      $region12: #{eisani_forward.1} parent=5 // pred_fallthru
        _
      %p205 = scmp.lt.s32.totalorder %s12, 2
      // Predicated region
      $region29: #{eisani_forward.1} parent=5 // pred_check
        %p206 = pneg %p205
      $region30: #{eisani_forward.1} parent=5 // pred_check_branch
        %208 = sbr.rel (%p206) target = $region32
      $region31: #{eisani_forward.1} parent=5 // pred_region
        _
      $region32: #{eisani_forward.1} parent=5 // pred_fallthru
        _
      %p209 = scmp.le.s32.totalorder 1, %s12
      %p210 = scmp.lt.s32.totalorder %s12, 3
      %p211 = pnand %p209, %p210
      %p212 = pneg %p211
      // Predicated region
      $region33: #{eisani_forward.1} parent=5 // pred_check
        _
      $region34: #{eisani_forward.1} parent=5 // pred_check_branch
        %214 = sbr.rel (%p211) target = $region36
      $region35: #{eisani_forward.1} parent=5 // pred_region
        %s215 = ssub.s32 %s12, 1
        // Predicated region
        $region37: #{eisani_forward.1} parent=35 // pred_check
          %p216 = pneg %p71
        $region38: #{eisani_forward.1} parent=35 // pred_check_branch
          %218 = sbr.rel (%p216) target = $region40
        $region39: #{eisani_forward.1} parent=35 // pred_region
          %220 = dma.done [#allocation4], 1024
        $region40: #{eisani_forward.1} parent=35 // pred_fallthru
          _
        // Predicated region
        $region41: #{eisani_forward.1} parent=35 // pred_check
          %p221 = pneg %p92
        $region42: #{eisani_forward.1} parent=35 // pred_check_branch
          %223 = sbr.rel (%p221) target = $region44
        $region43: #{eisani_forward.1} parent=35 // pred_region
          %225 = dma.done [#allocation6], 1024
        $region44: #{eisani_forward.1} parent=35 // pred_fallthru
          _
        // Predicated region
        $region45: #{eisani_forward.1} parent=35 // pred_check
          %p226 = pneg %p113
        $region46: #{eisani_forward.1} parent=35 // pred_check_branch
          %228 = sbr.rel (%p226) target = $region48
        $region47: #{eisani_forward.1} parent=35 // pred_region
          %230 = dma.done [#allocation6], 2048
        $region48: #{eisani_forward.1} parent=35 // pred_fallthru
          _
        %s231 = smul.u32 2, %s21
        %p232 = scmp.lt.s32.totalorder %s231, 1
        %s233 = scalar_select %p232, %s231, 1
        %s234 = smul.addr %s233, 4
        %s235 = scalar_lea.vmem %s0, %s234
        %p236 = pneg %p50
        %p237 = pneg %p47
        %p238 = pneg %p71
        %p239 = pneg %p68
        %p240 = pneg %p92
        %p241 = pneg %p89
        %p242 = pneg %p113
        %p243 = pneg %p110
        %p244 = pneg %p139
        %p245 = pneg %p136
        %s246 = smul.u32 2, %s21
        %p247 = scmp.lt.s32.totalorder %s246, 1
        %s248 = scalar_select %p247, %s246, 1
        %s249 = smul.addr %s248, 8
        %s250 = scalar_lea.vmem %s4, %s249
        %s251 = smul.u32 2, %s21
        %p252 = scmp.lt.s32.totalorder %s251, 1
        %s253 = scalar_select %p252, %s251, 1
        %s254 = smul.addr %s253, 4
        %s255 = scalar_lea.vmem %s0, %s254
        %s256 = smul.u32 2, %s21
        %s257 = smul.u32 2, %s21
        %p258 = scmp.lt.s32.totalorder %s257, 1
        %s259 = scalar_select %p258, %s257, 1
        %s260 = smul.addr %s259, 8
        %s261 = scalar_lea.vmem %s4, %s260
        %s262 = smul.u32 2, %s21
        %p263 = scmp.eq.s32.totalorder %s22, 0
        // Predicated region
        $region49: #{eisani_forward.1} parent=35 // pred_check
          %p264 = pneg %p263
        $region50: #{eisani_forward.1} parent=35 // pred_check_branch
          %266 = sbr.rel (%p264) target = $region52
        $region51: #{eisani_forward.1} parent=35 // pred_region
          %267 = vst [vmem:[%s261] sm:$0xff] 0.0
          %268 = vst [vmem:[%s261 + $0x8] sm:$0xff] 0.0
          %v269 = vld [vmem:[#allocation7] sm:$0xf]
          %v270 = vld [vmem:[#allocation7 + $0x4] sm:$0xf]
          %v271 = vld [vmem:[#allocation7 + $0x8] sm:$0xf]
          %v272 = vld [vmem:[#allocation7 + $0xc] sm:$0xf]
          %v273 = vld [vmem:[#allocation7 + $0x10] sm:$0xf]
          %v274 = vld [vmem:[#allocation7 + $0x14] sm:$0xf]
          %v275 = vld [vmem:[#allocation7 + $0x18] sm:$0xf]
          %v276 = vld [vmem:[#allocation7 + $0x1c] sm:$0xf]
          %v277 = vld [vmem:[#allocation7 + $0x20] sm:$0xf]
          %v278 = vld [vmem:[#allocation7 + $0x24] sm:$0xf]
          %v279 = vld [vmem:[#allocation7 + $0x28] sm:$0xf]
          %v280 = vld [vmem:[#allocation7 + $0x2c] sm:$0xf]
          %v281 = vld [vmem:[#allocation7 + $0x30] sm:$0xf]
          %v282 = vld [vmem:[#allocation7 + $0x34] sm:$0xf]
          %v283 = vld [vmem:[#allocation7 + $0x38] sm:$0xf]
          %v284 = vld [vmem:[#allocation7 + $0x3c] sm:$0xf]
          %v285 = vld [vmem:[%s255] sm:$0xf]
          %v286 = vld [vmem:[%s255 + $0x4] sm:$0xf]
          %v287 = vld [vmem:[#allocation3] sm:$0xf]
          %v288 = vld [vmem:[#allocation3 + $0x4] sm:$0xf]
          %v289 = vld [vmem:[#allocation3 + $0x8] sm:$0xf]
          %v290 = vld [vmem:[#allocation3 + $0xc] sm:$0xf]
          %v291 = vld [vmem:[#allocation3 + $0x10] sm:$0xf]
          %v292 = vld [vmem:[#allocation3 + $0x14] sm:$0xf]
          %v293 = vld [vmem:[#allocation3 + $0x18] sm:$0xf]
          %v294 = vld [vmem:[#allocation3 + $0x1c] sm:$0xf]
          %v295 = vld [vmem:[#allocation3 + $0x20] sm:$0xf]
          %v296 = vld [vmem:[#allocation3 + $0x24] sm:$0xf]
          %v297 = vld [vmem:[#allocation3 + $0x28] sm:$0xf]
          %v298 = vld [vmem:[#allocation3 + $0x2c] sm:$0xf]
          %v299 = vld [vmem:[#allocation3 + $0x30] sm:$0xf]
          %v300 = vld [vmem:[#allocation3 + $0x34] sm:$0xf]
          %v301 = vld [vmem:[#allocation3 + $0x38] sm:$0xf]
          %v302 = vld [vmem:[#allocation3 + $0x3c] sm:$0xf]
          %v305 = vunpack.c.l.b16 %v285
          %v306 = vunpack.c.l.b16 %v286
          %v307 = vpack.c.b16 %v306, %v305
          %v325 = vunpack.c.l.b16 %v287
          %v326 = vunpack.c.l.b16 %v288
          %v327 = vunpack.c.l.b16 %v289
          %v328 = vunpack.c.l.b16 %v290
          %v329 = vunpack.c.l.b16 %v291
          %v330 = vunpack.c.l.b16 %v292
          %v331 = vunpack.c.l.b16 %v293
          %v332 = vunpack.c.l.b16 %v294
          %v333 = vunpack.c.l.b16 %v295
          %v334 = vunpack.c.l.b16 %v296
          %v335 = vunpack.c.l.b16 %v297
          %v336 = vunpack.c.l.b16 %v298
          %v337 = vunpack.c.l.b16 %v299
          %v338 = vunpack.c.l.b16 %v300
          %v339 = vunpack.c.l.b16 %v301
          %v340 = vunpack.c.l.b16 %v302
          %v341 = vpack.c.b16 %v326, %v325
          %v342 = vpack.c.b16 %v328, %v327
          %v343 = vpack.c.b16 %v330, %v329
          %v344 = vpack.c.b16 %v332, %v331
          %v345 = vpack.c.b16 %v334, %v333
          %v346 = vpack.c.b16 %v336, %v335
          %v347 = vpack.c.b16 %v338, %v337
          %v348 = vpack.c.b16 %v340, %v339
          %357 = vmatpush.bf16.msra.mxu0 %v348
          %358 = vmatpush.bf16.msra.mxu0 %v347
          %359 = vmatpush.bf16.msra.mxu0 %v346
          %360 = vmatpush.bf16.msra.mxu0 %v345
          %361 = vmatpush.bf16.msra.mxu0 %v344
          %362 = vmatpush.bf16.msra.mxu0 %v343
          %363 = vmatpush.bf16.msra.mxu0 %v342
          %364 = vmatpush.bf16.msra.mxu0 %v341
          %365 = vmatmul.bf16.gmra.mxu0 %v307
          %v366 = vpop.f32.mrf.mxu0
          %v367 = vadd.f32 0.0, %v366
          %v368 = vpop.f32.mrf.mxu0
          %v369 = vadd.f32 0.0, %v368
          %370 = vdwg.mxu0
          %vm371 = vcmp.ge.f32.partialorder %v367, 2.0
          %vm372 = vcmp.ge.f32.partialorder %v369, 2.0
          %v373 = vsel %vm371, 1, 0
          %v374 = vsel %vm372, 1, 0
          %v375 = vcvt.s32.f32 %v373
          %v376 = vcvt.s32.f32 %v374
          %v377 = vpack.c.bf16 %v375, %v375
          %v378 = vpack.c.bf16 %v376, %v376
          %379 = vst [vmem:[#allocation2] sm:$0xf] %v377
          %380 = vst [vmem:[#allocation2 + $0x4] sm:$0xf] %v378
          %v381 = vld [vmem:[%s261] sm:$0xff]
          %v382 = vld [vmem:[%s261 + $0x8] sm:$0xff]
          %v385 = vunpack.c.l.b16 %v377
          %v386 = vunpack.c.l.b16 %v378
          %v387 = vpack.c.b16 %v386, %v385
          %v405 = vunpack.c.l.b16 %v269
          %v406 = vunpack.c.l.b16 %v270
          %v407 = vunpack.c.l.b16 %v271
          %v408 = vunpack.c.l.b16 %v272
          %v409 = vunpack.c.l.b16 %v273
          %v410 = vunpack.c.l.b16 %v274
          %v411 = vunpack.c.l.b16 %v275
          %v412 = vunpack.c.l.b16 %v276
          %v413 = vunpack.c.l.b16 %v277
          %v414 = vunpack.c.l.b16 %v278
          %v415 = vunpack.c.l.b16 %v279
          %v416 = vunpack.c.l.b16 %v280
          %v417 = vunpack.c.l.b16 %v281
          %v418 = vunpack.c.l.b16 %v282
          %v419 = vunpack.c.l.b16 %v283
          %v420 = vunpack.c.l.b16 %v284
          %v421 = vpack.c.b16 %v406, %v405
          %v422 = vpack.c.b16 %v408, %v407
          %v423 = vpack.c.b16 %v410, %v409
          %v424 = vpack.c.b16 %v412, %v411
          %v425 = vpack.c.b16 %v414, %v413
          %v426 = vpack.c.b16 %v416, %v415
          %v427 = vpack.c.b16 %v418, %v417
          %v428 = vpack.c.b16 %v420, %v419
          %437 = vmatpush.bf16.msra.mxu0 %v428
          %438 = vmatpush.bf16.msra.mxu0 %v427
          %439 = vmatpush.bf16.msra.mxu0 %v426
          %440 = vmatpush.bf16.msra.mxu0 %v425
          %441 = vmatpush.bf16.msra.mxu0 %v424
          %442 = vmatpush.bf16.msra.mxu0 %v423
          %443 = vmatpush.bf16.msra.mxu0 %v422
          %444 = vmatpush.bf16.msra.mxu0 %v421
          %445 = vmatmul.bf16.gmra.mxu0 %v387
          %v446 = vpop.f32.mrf.mxu0
          %v447 = vadd.f32 0.0, %v446
          %v448 = vpop.f32.mrf.mxu0
          %v449 = vadd.f32 0.0, %v448
          %450 = vdwg.mxu0
          %v451 = vadd.f32 %v381, %v447
          %v452 = vadd.f32 %v382, %v449
          %453 = vst [vmem:[%s261] sm:$0xff] %v451
          %454 = vst [vmem:[%s261 + $0x8] sm:$0xff] %v452
        $region52: #{eisani_forward.1} parent=35 // pred_fallthru
          _
        %p455 = scmp.gt.s32.totalorder %s22, 0
        // Predicated region
        $region53: #{eisani_forward.1} parent=35 // pred_check
          %p456 = pneg %p455
        $region54: #{eisani_forward.1} parent=35 // pred_check_branch
          %458 = sbr.rel (%p456) target = $region56
        $region55: #{eisani_forward.1} parent=35 // pred_region
          %s459 = ssub.s32 %s22, 1
          %s460 = smul.u32 %s459, 16
          %s461 = smul.addr %s460, 4
          %s462 = scalar_lea.vmem [#allocation5], %s461
          %v463 = vld [vmem:[%s462] sm:$0xf]
          %v464 = vld [vmem:[%s462 + $0x4] sm:$0xf]
          %v465 = vld [vmem:[%s462 + $0x8] sm:$0xf]
          %v466 = vld [vmem:[%s462 + $0xc] sm:$0xf]
          %v467 = vld [vmem:[%s462 + $0x10] sm:$0xf]
          %v468 = vld [vmem:[%s462 + $0x14] sm:$0xf]
          %v469 = vld [vmem:[%s462 + $0x18] sm:$0xf]
          %v470 = vld [vmem:[%s462 + $0x1c] sm:$0xf]
          %v471 = vld [vmem:[%s462 + $0x20] sm:$0xf]
          %v472 = vld [vmem:[%s462 + $0x24] sm:$0xf]
          %v473 = vld [vmem:[%s462 + $0x28] sm:$0xf]
          %v474 = vld [vmem:[%s462 + $0x2c] sm:$0xf]
          %v475 = vld [vmem:[%s462 + $0x30] sm:$0xf]
          %v476 = vld [vmem:[%s462 + $0x34] sm:$0xf]
          %v477 = vld [vmem:[%s462 + $0x38] sm:$0xf]
          %v478 = vld [vmem:[%s462 + $0x3c] sm:$0xf]
          %s479 = smul.u32 %s22, 16
          %s480 = smul.addr %s479, 4
          %s481 = scalar_lea.vmem [#allocation7], %s480
          %v482 = vld [vmem:[%s481] sm:$0xf]
          %v483 = vld [vmem:[%s481 + $0x4] sm:$0xf]
          %v484 = vld [vmem:[%s481 + $0x8] sm:$0xf]
          %v485 = vld [vmem:[%s481 + $0xc] sm:$0xf]
          %v486 = vld [vmem:[%s481 + $0x10] sm:$0xf]
          %v487 = vld [vmem:[%s481 + $0x14] sm:$0xf]
          %v488 = vld [vmem:[%s481 + $0x18] sm:$0xf]
          %v489 = vld [vmem:[%s481 + $0x1c] sm:$0xf]
          %v490 = vld [vmem:[%s481 + $0x20] sm:$0xf]
          %v491 = vld [vmem:[%s481 + $0x24] sm:$0xf]
          %v492 = vld [vmem:[%s481 + $0x28] sm:$0xf]
          %v493 = vld [vmem:[%s481 + $0x2c] sm:$0xf]
          %v494 = vld [vmem:[%s481 + $0x30] sm:$0xf]
          %v495 = vld [vmem:[%s481 + $0x34] sm:$0xf]
          %v496 = vld [vmem:[%s481 + $0x38] sm:$0xf]
          %v497 = vld [vmem:[%s481 + $0x3c] sm:$0xf]
          %v498 = vld [vmem:[#allocation2] sm:$0xf]
          %v499 = vld [vmem:[#allocation2 + $0x4] sm:$0xf]
          %v502 = vunpack.c.l.b16 %v498
          %v503 = vunpack.c.l.b16 %v499
          %v504 = vpack.c.b16 %v503, %v502
          %v522 = vunpack.c.l.b16 %v463
          %v523 = vunpack.c.l.b16 %v464
          %v524 = vunpack.c.l.b16 %v465
          %v525 = vunpack.c.l.b16 %v466
          %v526 = vunpack.c.l.b16 %v467
          %v527 = vunpack.c.l.b16 %v468
          %v528 = vunpack.c.l.b16 %v469
          %v529 = vunpack.c.l.b16 %v470
          %v530 = vunpack.c.l.b16 %v471
          %v531 = vunpack.c.l.b16 %v472
          %v532 = vunpack.c.l.b16 %v473
          %v533 = vunpack.c.l.b16 %v474
          %v534 = vunpack.c.l.b16 %v475
          %v535 = vunpack.c.l.b16 %v476
          %v536 = vunpack.c.l.b16 %v477
          %v537 = vunpack.c.l.b16 %v478
          %v538 = vpack.c.b16 %v523, %v522
          %v539 = vpack.c.b16 %v525, %v524
          %v540 = vpack.c.b16 %v527, %v526
          %v541 = vpack.c.b16 %v529, %v528
          %v542 = vpack.c.b16 %v531, %v530
          %v543 = vpack.c.b16 %v533, %v532
          %v544 = vpack.c.b16 %v535, %v534
          %v545 = vpack.c.b16 %v537, %v536
          %554 = vmatpush.bf16.msra.mxu0 %v545
          %555 = vmatpush.bf16.msra.mxu0 %v544
          %556 = vmatpush.bf16.msra.mxu0 %v543
          %557 = vmatpush.bf16.msra.mxu0 %v542
          %558 = vmatpush.bf16.msra.mxu0 %v541
          %559 = vmatpush.bf16.msra.mxu0 %v540
          %560 = vmatpush.bf16.msra.mxu0 %v539
          %561 = vmatpush.bf16.msra.mxu0 %v538
          %562 = vmatmul.bf16.gmra.mxu0 %v504
          %v563 = vpop.f32.mrf.mxu0
          %v564 = vadd.f32 0.0, %v563
          %v565 = vpop.f32.mrf.mxu0
          %v566 = vadd.f32 0.0, %v565
          %567 = vdwg.mxu0
          %vm568 = vcmp.ge.f32.partialorder %v564, 2.0
          %vm569 = vcmp.ge.f32.partialorder %v566, 2.0
          %v570 = vsel %vm568, 1, 0
          %v571 = vsel %vm569, 1, 0
          %v572 = vcvt.s32.f32 %v570
          %v573 = vcvt.s32.f32 %v571
          %v574 = vpack.c.bf16 %v572, %v572
          %v575 = vpack.c.bf16 %v573, %v573
          %576 = vst [vmem:[#allocation2] sm:$0xf] %v574
          %577 = vst [vmem:[#allocation2 + $0x4] sm:$0xf] %v575
          %v578 = vld [vmem:[%s261] sm:$0xff]
          %v579 = vld [vmem:[%s261 + $0x8] sm:$0xff]
          %v582 = vunpack.c.l.b16 %v574
          %v583 = vunpack.c.l.b16 %v575
          %v584 = vpack.c.b16 %v583, %v582
          %v602 = vunpack.c.l.b16 %v482
          %v603 = vunpack.c.l.b16 %v483
          %v604 = vunpack.c.l.b16 %v484
          %v605 = vunpack.c.l.b16 %v485
          %v606 = vunpack.c.l.b16 %v486
          %v607 = vunpack.c.l.b16 %v487
          %v608 = vunpack.c.l.b16 %v488
          %v609 = vunpack.c.l.b16 %v489
          %v610 = vunpack.c.l.b16 %v490
          %v611 = vunpack.c.l.b16 %v491
          %v612 = vunpack.c.l.b16 %v492
          %v613 = vunpack.c.l.b16 %v493
          %v614 = vunpack.c.l.b16 %v494
          %v615 = vunpack.c.l.b16 %v495
          %v616 = vunpack.c.l.b16 %v496
          %v617 = vunpack.c.l.b16 %v497
          %v618 = vpack.c.b16 %v603, %v602
          %v619 = vpack.c.b16 %v605, %v604
          %v620 = vpack.c.b16 %v607, %v606
          %v621 = vpack.c.b16 %v609, %v608
          %v622 = vpack.c.b16 %v611, %v610
          %v623 = vpack.c.b16 %v613, %v612
          %v624 = vpack.c.b16 %v615, %v614
          %v625 = vpack.c.b16 %v617, %v616
          %634 = vmatpush.bf16.msra.mxu0 %v625
          %635 = vmatpush.bf16.msra.mxu0 %v624
          %636 = vmatpush.bf16.msra.mxu0 %v623
          %637 = vmatpush.bf16.msra.mxu0 %v622
          %638 = vmatpush.bf16.msra.mxu0 %v621
          %639 = vmatpush.bf16.msra.mxu0 %v620
          %640 = vmatpush.bf16.msra.mxu0 %v619
          %641 = vmatpush.bf16.msra.mxu0 %v618
          %642 = vmatmul.bf16.gmra.mxu0 %v584
          %v643 = vpop.f32.mrf.mxu0
          %v644 = vadd.f32 0.0, %v643
          %v645 = vpop.f32.mrf.mxu0
          %v646 = vadd.f32 0.0, %v645
          %647 = vdwg.mxu0
          %v648 = vadd.f32 %v578, %v644
          %v649 = vadd.f32 %v579, %v646
          %650 = vst [vmem:[%s261] sm:$0xff] %v648
          %651 = vst [vmem:[%s261 + $0x8] sm:$0xff] %v649
        $region56: #{eisani_forward.1} parent=35 // pred_fallthru
          _
        %s652 = smul.u32 2, %s21
        %p653 = scmp.lt.s32.totalorder %s652, 1
        %s654 = scalar_select %p653, %s652, 1
        %s655 = smul.addr %s654, 8
        %s656 = scalar_lea.vmem %s4, %s655
        // Predicated region
        $region57: #{eisani_forward.1} parent=35 // pred_check
          %p657 = pneg %p136
        $region58: #{eisani_forward.1} parent=35 // pred_check_branch
          %659 = sbr.rel (%p657) target = $region60
        $region59: #{eisani_forward.1} parent=35 // pred_region
          %s660 = smul.u32 2, %s21
        $region60: #{eisani_forward.1} parent=35 // pred_fallthru
          _
        // Predicated region
        $region61: #{eisani_forward.1} parent=35 // pred_check
          %p661 = pneg %p136
        $region62: #{eisani_forward.1} parent=35 // pred_check_branch
          %663 = sbr.rel (%p661) target = $region64
        $region63: #{eisani_forward.1} parent=35 // pred_region
          %s664 = smul.u32 2, %s21
          %p665 = scmp.lt.s32.totalorder %s664, 1
          %s666 = scalar_select %p665, %s664, 1
          %s667 = smul.addr %s666, 8
          %s668 = scalar_lea.vmem %s4, %s667
        $region64: #{eisani_forward.1} parent=35 // pred_fallthru
          _
      $region36: #{eisani_forward.1} parent=5 // pred_fallthru
        _
      %p669 = scmp.le.s32.totalorder 2, %s12
      // Predicated region
      $region65: #{eisani_forward.1} parent=5 // pred_check
        %p670 = pneg %p669
      $region66: #{eisani_forward.1} parent=5 // pred_check_branch
        %672 = sbr.rel (%p670) target = $region68
      $region67: #{eisani_forward.1} parent=5 // pred_region
        %s673 = ssub.s32 %s12, 2
      $region68: #{eisani_forward.1} parent=5 // pred_fallthru
        _
    $region6: #{eisani_forward.1} parent=1 // loop_footer
      %s16 = sadd.s32 1, %s12
    $region7: #{eisani_forward.1} parent=1 // loop_footer_branch
      %11 = sbr.rel target = $region3
    $region8: #{eisani_forward.1} parent=1 // loop_exit
      _
    %674 = vsyncpa [#allocation4], 1
    %s675 = scalar_lea.sflag [#allocation4], 1
    %676 = vsyncpa %s675, 1
    %677 = vsyncpa [#allocation6], 1

</llo_original>
